<compile_context>
chip_gen: v6e
topology: v6e:2x2x1
jax: 0.10.0
libtpu: 0.0.40
codegen_flags: <defaults>
</compile_context>

<pallas_src>
import jax
import jax.numpy as jnp
from jax.experimental import pallas as pl
from jax.experimental.pallas import tpu as pltpu

MAX_VALUE = 255
VOCAB_PER_CH = 256  # 255 real rows per channel, padded to 256 (zero row)


def _bow_kernel(x_ref, tbl_ref, o_ref):
    # x_ref:   (C, TP)       uint8   raw per-channel pixel values in [0, 255)
    # tbl_ref: (2*D, C*256)  bf16    [table_hi ; table_lo] stacked along rows
    # o_ref:   (D, TP)       f32     sum over channels of embedding rows
    c_dim, tp = x_ref.shape
    k = tbl_ref.shape[1]
    d = o_ref.shape[0]
    vpc = k // c_dim

    xi = x_ref[...].astype(jnp.int32)                                   # (C, TP)

    # One fused compare builds the whole multi-hot; convert directly to the
    # dtype fed to the MXU.  Reshape (C, 256, TP) -> (C*256, TP) is free
    # (256 is sublane-tile aligned, TP is lane aligned).
    iota_v = jax.lax.broadcasted_iota(jnp.int32, (c_dim, vpc, tp), 1)   # (C,256,TP)
    onehot = (iota_v == xi[:, None, :]).astype(jnp.bfloat16)
    onehot = onehot.reshape(k, tp)                                      # (C*256, TP)

    # Single K = C*256 matmul; hi and lo table halves share the one MXU launch.
    res = jnp.dot(tbl_ref[...], onehot,
                  preferred_element_type=jnp.float32)                   # (2D, TP)
    o_ref[...] = res[:d, :] + res[d:, :]


def prepare_bow_table(table, num_channels):
    """(C*255, D) f32 embedding table -> (2*D, C*256) bf16 hi/lo kernel table.

    Hoist this to model init in real use; it only depends on the parameters.
    """
    V, D = table.shape
    assert V == num_channels * MAX_VALUE, (V, num_channels)
    tbl = table.astype(jnp.float32).reshape(num_channels, MAX_VALUE, D)
    tbl = jnp.pad(tbl, ((0, 0), (0, VOCAB_PER_CH - MAX_VALUE), (0, 0)))
    # (C, 256, D) -> (D, C, 256) -> (D, C*256): row index = c*256 + value.
    tbl_t = jnp.transpose(tbl, (2, 0, 1)).reshape(D, num_channels * VOCAB_PER_CH)
    hi = tbl_t.astype(jnp.bfloat16)
    lo = (tbl_t - hi.astype(jnp.float32)).astype(jnp.bfloat16)
    return jnp.concatenate([hi, lo], axis=0)                  # (2*D, C*256) bf16


def image_bow_embedding(x, table, *, tile_p_target=1024):
    """x: (B, C, H, W), integer values in [0, 255); table: (C*255, D) f32.

    Returns (B, D, H, W) float32, matching ImageBOWEmbedding.forward.
    """
    B, C, H, W = x.shape
    V, D = table.shape
    assert V == C * MAX_VALUE, (V, C)

    tbl2 = prepare_bow_table(table, C)        # precomputable at init (hoistable)
    K = C * VOCAB_PER_CH

    # ---- pixel-tile selection: batch is folded into the lane axis -----------
    lane = 128
    P = B * H * W
    p_aligned = pl.cdiv(P, lane) * lane
    tile_p = min(tile_p_target, p_aligned)
    tile_p = pl.cdiv(tile_p, lane) * lane
    # Guarantee >=2 grid steps along the parallel axis (v7x megacore) whenever
    # the problem is big enough to split.
    if pl.cdiv(P, tile_p) < 2 and tile_p > lane:
        tile_p = pl.cdiv(tile_p // 2, lane) * lane
    p_pad = pl.cdiv(P, tile_p) * tile_p

    # (B, C, H, W) -> (C, B*H*W): one small uint8 transpose in the wrapper so
    # tiles can span batch elements; uint8 shrinks the input DMA stream 4x.
    xf = jnp.transpose(x.astype(jnp.uint8), (1, 0, 2, 3)).reshape(C, P)
    if p_pad != P:
        xf = jnp.pad(xf, ((0, 0), (0, p_pad - P)))

    out = pl.pallas_call(
        _bow_kernel,
        out_shape=jax.ShapeDtypeStruct((D, p_pad), jnp.float32),
        grid_spec=pltpu.PrefetchScalarGridSpec(
            num_scalar_prefetch=0,
            grid=(p_pad // tile_p,),
            in_specs=[
                pl.BlockSpec((C, tile_p), lambda p: (0, p)),        # pixels
                pl.BlockSpec((2 * D, K), lambda p: (0, 0)),         # table, DMA'd once
            ],
            out_specs=pl.BlockSpec((D, tile_p), lambda p: (0, p)),  # lane-dense
        ),
        compiler_params=pltpu.CompilerParams(
            dimension_semantics=("parallel",)),
    )(xf, tbl2)

    # Undo the batch fold (cheap at BabyAI sizes); keep f32 output for the
    # 1e-4 tolerance vs. the gather reference.
    out = out[:, :P].reshape(D, B, H, W)
    return jnp.transpose(out, (1, 0, 2, 3))                      # (B, D, H, W)


def reference(x, table, C):
    """Pure-JAX reference mirroring the PyTorch forward exactly."""
    offsets = jnp.arange(C, dtype=jnp.float32) * MAX_VALUE
    idx = (x + offsets[None, :, None, None]).astype(jnp.int32)    # .long()
    emb = table[idx]                                              # (B,C,H,W,D)
    return jnp.transpose(emb.sum(axis=1), (0, 3, 1, 2))           # (B,D,H,W)


if __name__ == "__main__":
    key = jax.random.PRNGKey(0)
    k1, k2 = jax.random.split(key)

    # space = (H, W, C) as in BabyAI observation spaces.
    B, H, W, C = 2, 16, 16, 3
    embedding_dim = 32

    # Integer-valued image features (stored as float, like the torch inputs).
    x = jax.random.randint(k1, (B, C, H, W), 0, MAX_VALUE).astype(jnp.float32)

    # nn.Embedding default init is N(0, 1); 'Embedding' does not match 'Linear'
    # in initialize_parameters, so the default init is what the module uses.
    table = jax.random.normal(k2, (C * MAX_VALUE, embedding_dim),
                              dtype=jnp.float32)

    out = image_bow_embedding(x, table)
    jax.block_until_ready(out)

    ref = reference(x, table, C)
    assert out.shape == (B, embedding_dim, H, W), out.shape
    assert jnp.allclose(out, ref, atol=1e-4, rtol=1e-4), "mismatch vs reference"

    print("KERNEL_OK")
</pallas_src>

<mosaic_0001>
module attributes {stable_mosaic.version = 11 : i64} {
  func.func @_bow_kernel(%arg0: i32, %arg1: memref<3x256xi8, #tpu.memory_space<vmem>>, %arg2: memref<64x768xbf16, #tpu.memory_space<vmem>>, %arg3: memref<32x256xf32, #tpu.memory_space<vmem>>) attributes {dimension_semantics = [#tpu.dimension_semantics<parallel>], iteration_bounds = array<i64: 2>, scalar_prefetch = 0 : i64, scratch_operands = 0 : i64, tpu.core_type = #tpu.core_type<tc>, window_params = [{transform_indices = @transform_0, window_bounds = array<i64: 3, 256>}, {pipeline_mode = #tpu.pipeline_mode<synchronous>, transform_indices = @transform_1, window_bounds = array<i64: 64, 768>}, {transform_indices = @transform_2, window_bounds = array<i64: 32, 256>}]} {
    %c0 = arith.constant 0 : index
    %c0_0 = arith.constant 0 : index
    %0 = vector.load %arg1[%c0, %c0_0] : memref<3x256xi8, #tpu.memory_space<vmem>>, vector<3x256xi8>
    %1 = arith.extui %0 : vector<3x256xi8> to vector<3x256xi32>
    %2 = tpu.iota {dimensions = array<i32: 1>} : vector<3x256x256xi32>
    %3 = vector.shape_cast %1 : vector<3x256xi32> to vector<3x1x256xi32>
    %4 = vector.broadcast %3 : vector<3x1x256xi32> to vector<3x256x256xi32>
    %5 = arith.cmpi eq, %2, %4 : vector<3x256x256xi32>
    %6 = arith.extui %5 : vector<3x256x256xi1> to vector<3x256x256xi32>
    %7 = arith.sitofp %6 : vector<3x256x256xi32> to vector<3x256x256xf32>
    %8 = arith.truncf %7 : vector<3x256x256xf32> to vector<3x256x256xbf16>
    %9 = vector.shape_cast %8 : vector<3x256x256xbf16> to vector<768x256xbf16>
    %c0_1 = arith.constant 0 : index
    %c0_2 = arith.constant 0 : index
    %10 = vector.load %arg2[%c0_1, %c0_2] : memref<64x768xbf16, #tpu.memory_space<vmem>>, vector<64x768xbf16>
    %cst = arith.constant dense<0.000000e+00> : vector<64x256xf32>
    %11 = tpu.matmul %10, %9, %cst {dimension_numbers = #tpu.dot_dimension_numbers<[1], [0], [0], [1], [0, 0, 1, 1], [], []>} : vector<64x768xbf16>, vector<768x256xbf16>, vector<64x256xf32> -> vector<64x256xf32>
    %12 = vector.extract_strided_slice %11 {offsets = [0, 0], sizes = [32, 256], strides = [1, 1]} : vector<64x256xf32> to vector<32x256xf32>
    %13 = vector.extract_strided_slice %11 {offsets = [32, 0], sizes = [32, 256], strides = [1, 1]} : vector<64x256xf32> to vector<32x256xf32>
    %14 = arith.addf %12, %13 : vector<32x256xf32>
    %c0_3 = arith.constant 0 : index
    %c0_4 = arith.constant 0 : index
    %15 = vector.load %arg3[%c0_3, %c0_4] : memref<32x256xf32, #tpu.memory_space<vmem>>, vector<32x256xf32>
    tpu.vector_store %arg3[%c0_3, %c0_4], %14 {strides = array<i32>} : memref<32x256xf32, #tpu.memory_space<vmem>>, vector<32x256xf32>,
    return
  }
  func.func @transform_0(%arg0: i32) -> (i32, i32) {
    %c0_i32 = arith.constant 0 : i32
    %c0_i32_0 = arith.constant 0 : i32
    return %c0_i32, %arg0 : i32, i32
  }
  func.func @transform_1(%arg0: i32) -> (i32, i32) {
    %c0_i32 = arith.constant 0 : i32
    %c0_i32_0 = arith.constant 0 : i32
    %c0_i32_1 = arith.constant 0 : i32
    return %c0_i32, %c0_i32_0 : i32, i32
  }
  func.func @transform_2(%arg0: i32) -> (i32, i32) {
    %c0_i32 = arith.constant 0 : i32
    %c0_i32_0 = arith.constant 0 : i32
    return %c0_i32, %arg0 : i32, i32
  }
}

</mosaic_0001>

<llo_original>
// kernel: tpu_custom_call.1
$region0: #{tpu_custom_call.1}
  #allocation0 [shape = 'u32[]', space=smem, size = 0x4, offset = 0x4, fixed_abs, tag = 'smem constant byte address 0x4 - core index']
  #allocation1 [shape = 'u32[144,128]{1,0:T(1,128)}', space=vmem, size = 0x12000, scoped, tag = 'internal scratch']
  %s0 = inlined_call_operand.hbm [shape: u8[3,512], index: 0, kind: input, shape index: {}]
  %s1 = inlined_call_operand.hbm [shape: bf16[64,768], index: 1, kind: input, shape index: {}]
  %s2 = inlined_call_operand.hbm [shape: f32[32,512], index: 2, kind: output, shape index: {}]
  %s3 = sld [smem:[#allocation0]]
  $region49: #{tpu_custom_call.1} parent=0
    _
  %s5 = ssub.s32 1, %s3
  %s6 = scalar_select 0, %s5, %s3
  $region1: #{tpu_custom_call.1} parent=0
    #allocation2 [shape = 'u8[2048]{0}', space=vmem, size = 0x800, scoped, tag = 'input window, operand 0']
    #allocation3 [shape = 's32[2]{0}', space=sflag, size = 0x8, scoped, tag = 'scoped memory for tpu_custom_call.1']
    #allocation4 [shape = 's32[2]{0}', space=sflag, size = 0x8, scoped, tag = 'scoped memory for tpu_custom_call.1']
    #allocation5 [shape = 'u8[98304]{0}', space=vmem, size = 0x18000, scoped, tag = 'input window, operand 1, single buffered']
    #allocation6 [shape = 's32[1]{0}', space=sflag, size = 0x4, scoped, tag = 'scoped memory for tpu_custom_call.1']
    #allocation7 [shape = 'u8[65536]{0}', space=vmem, size = 0x10000, scoped, tag = 'output window, operand 0']
    %7 = vsyncpa [#allocation3], 0
    %s8 = scalar_lea.sflag [#allocation3], 1
    %9 = vsyncpa %s8, 0
    %10 = vsyncpa [#allocation6], 0
    %11 = vsyncpa [#allocation4], 0
    %s12 = scalar_lea.sflag [#allocation4], 1
    %13 = vsyncpa %s12, 0
    loop: start=0, step=1, limit=4
    $region2: #{tpu_custom_call.1} parent=1 // loop_pre_header
      _
    $region3: #{tpu_custom_call.1} parent=1 // loop_header
      %s15 = sphi 0, %s19
      %p16 = scmp.ge.s32.totalorder %s15, 4
      %s25 = sphi 0, %s27
      %s28 = sphi 0, %s25
      %s29 = sphi 0, %s28
      %s45 = sphi 0, %s29
      %s49 = sphi 0, %s49
      %s51 = sphi 0, %s49
      %s52 = sphi 0, %s51
      %s66 = sphi 0, %s52
      %s72 = sphi 0, %s74
      %s75 = sphi 0, %s72
      %s76 = sphi 0, %s75
      %s92 = sphi 0, %s76
    $region4: #{tpu_custom_call.1} parent=1 // loop_header_branch
      %18 = sbr.rel (%p16) target = $region8
    $region5: #{tpu_custom_call.1} parent=1 // loop_body
      %s20 = ssub.s32 %s15, 1
      %s21 = ssub.s32 %s15, 2
      %s22 = sadd.s32 %s15, 1
      %s23 = ssub.s32 %s15, %s22
      %p24 = scmp.eq.s32.totalorder %s23, 0
      %s26 = sadd.s32 %s25, 1
      %s27 = scalar_select %p24, %s25, %s26
      %p30 = pneg %p24
      %p31 = scmp.eq.s32.totalorder %s15, 1
      %p32 = por %p30, %p31
      %p33 = scmp.ne.s32.totalorder %s25, %s28
      %p34 = scmp.eq.s32.totalorder %s15, 0
      %p35 = por %p33, %p34
      %p36 = scmp.ne.s32.totalorder %s25, %s28
      %p37 = scmp.eq.s32.totalorder %s20, 1
      %p38 = por %p36, %p37
      %p39 = scmp.ne.s32.totalorder %s28, %s29
      %p40 = scmp.eq.s32.totalorder %s20, 0
      %p41 = por %p39, %p40
      %p42 = scmp.ne.s32.totalorder %s28, %s29
      %p43 = scmp.eq.s32.totalorder %s21, 1
      %p44 = por %p42, %p43
      %p46 = scmp.ne.s32.totalorder %s29, %s45
      %p47 = scmp.eq.s32.totalorder %s21, 0
      %p48 = por %p46, %p47
      %s50 = sadd.s32 %s49, 1
      %p53 = scmp.eq.s32.totalorder %s15, 1
      %p54 = scmp.ne.s32.totalorder %s49, %s51
      %p55 = scmp.eq.s32.totalorder %s15, 0
      %p56 = por %p54, %p55
      %p57 = scmp.ne.s32.totalorder %s49, %s51
      %p58 = scmp.eq.s32.totalorder %s20, 1
      %p59 = por %p57, %p58
      %p60 = scmp.ne.s32.totalorder %s51, %s52
      %p61 = scmp.eq.s32.totalorder %s20, 0
      %p62 = por %p60, %p61
      %p63 = scmp.ne.s32.totalorder %s51, %s52
      %p64 = scmp.eq.s32.totalorder %s21, 1
      %p65 = por %p63, %p64
      %p67 = scmp.ne.s32.totalorder %s52, %s66
      %p68 = scmp.eq.s32.totalorder %s21, 0
      %p69 = por %p67, %p68
      %s70 = ssub.s32 %s15, %s22
      %p71 = scmp.eq.s32.totalorder %s70, 0
      %s73 = sadd.s32 %s72, 1
      %s74 = scalar_select %p71, %s72, %s73
      %p77 = pneg %p71
      %p78 = scmp.eq.s32.totalorder %s15, 1
      %p79 = por %p77, %p78
      %p80 = scmp.ne.s32.totalorder %s72, %s75
      %p81 = scmp.eq.s32.totalorder %s15, 0
      %p82 = por %p80, %p81
      %p83 = scmp.ne.s32.totalorder %s72, %s75
      %p84 = scmp.eq.s32.totalorder %s20, 1
      %p85 = por %p83, %p84
      %p86 = scmp.ne.s32.totalorder %s75, %s76
      %p87 = scmp.eq.s32.totalorder %s20, 0
      %p88 = por %p86, %p87
      %p89 = scmp.ne.s32.totalorder %s75, %s76
      %p90 = scmp.eq.s32.totalorder %s21, 1
      %p91 = por %p89, %p90
      %p93 = scmp.ne.s32.totalorder %s76, %s92
      %p94 = scmp.eq.s32.totalorder %s21, 0
      %p95 = por %p93, %p94
      %p96 = scmp.le.s32.totalorder 1, %s15
      %p97 = scmp.lt.s32.totalorder %s15, 3
      %p98 = pnand %p96, %p97
      %p99 = pneg %p98
      // Predicated region
      $region9: #{tpu_custom_call.1} parent=5 // pred_check
        _
      $region10: #{tpu_custom_call.1} parent=5 // pred_check_branch
        %101 = sbr.rel (%p98) target = $region12
      $region11: #{tpu_custom_call.1} parent=5 // pred_region
        %s102 = ssub.s32 %s15, 1
        // Predicated region
        $region13: #{tpu_custom_call.1} parent=11 // pred_check
          %p103 = pneg %p62
        $region14: #{tpu_custom_call.1} parent=11 // pred_check_branch
          %105 = sbr.rel (%p103) target = $region16
        $region15: #{tpu_custom_call.1} parent=11 // pred_region
          %s107 = ssub.s32 3072, 3072
          %108 = vsyncadd [#allocation6], %s107
          %s109 = sshll.u32 [#allocation5], 4
          %s110 = int_to_ptr.vmem [resolvable:$true] %s109
          %115 = dma.hbm_to_vmem [thread:$0]  %s1, 3072, %s110, [#allocation6], 384, 384, 24
        $region16: #{tpu_custom_call.1} parent=11 // pred_fallthru
          _
      $region12: #{tpu_custom_call.1} parent=5 // pred_fallthru
        _
      %p116 = scmp.lt.s32.totalorder %s15, 2
      // Predicated region
      $region17: #{tpu_custom_call.1} parent=5 // pred_check
        %p117 = pneg %p116
      $region18: #{tpu_custom_call.1} parent=5 // pred_check_branch
        %119 = sbr.rel (%p117) target = $region20
      $region19: #{tpu_custom_call.1} parent=5 // pred_region
        // Predicated region
        $region21: #{tpu_custom_call.1} parent=19 // pred_check
          %p120 = pneg %p35
        $region22: #{tpu_custom_call.1} parent=19 // pred_check_branch
          %122 = sbr.rel (%p120) target = $region24
        $region23: #{tpu_custom_call.1} parent=19 // pred_region
          %s123 = sand.u32 %s25, 1
          %s124 = scalar_lea.sflag [#allocation3], %s123
          %s125 = sand.u32 %s25, 1
          %s126 = smul.addr %s125, 2
          %s127 = scalar_lea.vmem [#allocation2], %s126
          %s128 = smul.u32 2, %s15
          %s130 = ssub.s32 32, 32
          %131 = vsyncadd %s124, %s130
          %s132 = smul.addr %s128, 16
          %s133 = scalar_lea.hbm %s0, %s132
          %s135 = sshll.u32 %s127, 4
          %s136 = int_to_ptr.vmem [resolvable:$true] %s135
          %138 = dma.hbm_to_vmem [thread:$0]  %s133, 32, %s136, %s124
        $region24: #{tpu_custom_call.1} parent=19 // pred_fallthru
          _
      $region20: #{tpu_custom_call.1} parent=5 // pred_fallthru
        _
      %p139 = scmp.le.s32.totalorder 1, %s15
      %p140 = scmp.lt.s32.totalorder %s15, 3
      %p141 = pnand %p139, %p140
      %p142 = pneg %p141
      // Predicated region
      $region25: #{tpu_custom_call.1} parent=5 // pred_check
        _
      $region26: #{tpu_custom_call.1} parent=5 // pred_check_branch
        %144 = sbr.rel (%p141) target = $region28
      $region27: #{tpu_custom_call.1} parent=5 // pred_region
        %s145 = ssub.s32 %s15, 1
        %s146 = sand.u32 %s28, 1
        %s147 = scalar_lea.sflag [#allocation3], %s146
        %s148 = sand.u32 %s28, 1
        %s149 = smul.addr %s148, 2
        %s150 = scalar_lea.vmem [#allocation2], %s149
        // Predicated region
        $region29: #{tpu_custom_call.1} parent=27 // pred_check
          %p151 = pneg %p41
        $region30: #{tpu_custom_call.1} parent=27 // pred_check_branch
          %153 = sbr.rel (%p151) target = $region32
        $region31: #{tpu_custom_call.1} parent=27 // pred_region
          %154 = dma.done %s147, 32
        $region32: #{tpu_custom_call.1} parent=27 // pred_fallthru
          _
        // Predicated region
        $region33: #{tpu_custom_call.1} parent=27 // pred_check
          %p155 = pneg %p62
        $region34: #{tpu_custom_call.1} parent=27 // pred_check_branch
          %157 = sbr.rel (%p155) target = $region36
        $region35: #{tpu_custom_call.1} parent=27 // pred_region
          %158 = dma.done [#allocation6], 3072
        $region36: #{tpu_custom_call.1} parent=27 // pred_fallthru
          _
        %s159 = sand.u32 %s28, 1
        %s160 = scalar_lea.sflag [#allocation3], %s159
        %s161 = sand.u32 %s28, 1
        %s162 = smul.addr %s161, 2
        %s163 = scalar_lea.vmem [#allocation2], %s162
        %p164 = pneg %p41
        %p165 = pneg %p38
        %p166 = pneg %p62
        %p167 = pneg %p59
        %p168 = pneg %p88
        %p169 = pneg %p85
        %s170 = sand.u32 %s75, 1
        %s171 = scalar_lea.sflag [#allocation4], %s170
        %s172 = sand.u32 %s75, 1
        %s173 = smul.addr %s172, 64
        %s174 = scalar_lea.vmem [#allocation7], %s173
        %s175 = smul.u32 2, %s20
        %s176 = smul.u32 2, %s20
        %v177 = vld [vmem:[%s150] sm:$0x3]
        %v178 = vunpack.c.0.s8 %v177
        %v179 = vand.u32 %v178, 255
        %v180 = vlaneseq
        %v181 = vshrl.u32 %v180, 7
        %v182 = vadd.s32 %v181, 8
        %v183 = vadd.s32 %v181, 16
        %v184 = vadd.s32 %v181, 24
        %v185 = vadd.s32 %v181, 32
        %v186 = vadd.s32 %v181, 40
        %v187 = vadd.s32 %v181, 48
        %v188 = vadd.s32 %v181, 56
        %v189 = vadd.s32 %v181, 64
        %v190 = vadd.s32 %v181, 72
        %v191 = vadd.s32 %v181, 80
        %v192 = vadd.s32 %v181, 88
        %v193 = vadd.s32 %v181, 96
        %v194 = vadd.s32 %v181, 104
        %v195 = vadd.s32 %v181, 112
        %v196 = vadd.s32 %v181, 120
        %v197 = vadd.s32 %v181, 128
        %v198 = vadd.s32 %v181, 136
        %v199 = vadd.s32 %v181, 144
        %v200 = vadd.s32 %v181, 152
        %v201 = vadd.s32 %v181, 160
        %v202 = vadd.s32 %v181, 168
        %v203 = vadd.s32 %v181, 176
        %v204 = vadd.s32 %v181, 184
        %v205 = vadd.s32 %v181, 192
        %v206 = vadd.s32 %v181, 200
        %v207 = vadd.s32 %v181, 208
        %v208 = vadd.s32 %v181, 216
        %v209 = vadd.s32 %v181, 224
        %v210 = vadd.s32 %v181, 232
        %v211 = vadd.s32 %v181, 240
        %v212 = vadd.s32 %v181, 248
        %v214 = vunpack.c.l.s4 1966171168
        %v215 = vunpack.c.0.s8 %v214
        %v216 = vlaneseq
        %v217 = vshrl.u32 %v216, 7
        %v218 = vsub.s32 %v215, %v217
        %v219 = vrot.slane %v179, %v218
        %v220 = vcombine.high %v219, %v219
        %v222 = vunpack.c.l.s4 1966171168
        %v223 = vunpack.c.0.s8 %v222
        %v224 = vlaneseq
        %v225 = vshrl.u32 %v224, 7
        %v226 = vsub.s32 %v223, %v225
        %v227 = vrot.slane %v219, %v226
        %v229 = vunpack.c.l.s4 1966171168
        %v230 = vunpack.c.0.s8 %v229
        %v231 = vlaneseq
        %v232 = vshrl.u32 %v231, 7
        %v233 = vsub.s32 %v230, %v232
        %v234 = vrot.slane %v220, %v233
        %v235 = vcombine.high %v227, %v227
        %v236 = vlaneseq
        %v237 = vshrl.u32 %v236, 7
        %v238 = vsub.s32 0, %v237
        %v239 = vrot.slane %v227, %v238
        %v240 = vlaneseq
        %v241 = vshrl.u32 %v240, 7
        %v242 = vsub.s32 1, %v241
        %v243 = vrot.slane %v227, %v242
        %v244 = vlaneseq
        %v245 = vshrl.u32 %v244, 7
        %v246 = vsub.s32 0, %v245
        %v247 = vrot.slane %v234, %v246
        %v248 = vlaneseq
        %v249 = vshrl.u32 %v248, 7
        %v250 = vsub.s32 1, %v249
        %v251 = vrot.slane %v234, %v250
        %v252 = vlaneseq
        %v253 = vshrl.u32 %v252, 7
        %v254 = vsub.s32 0, %v253
        %v255 = vrot.slane %v235, %v254
        %v256 = vlaneseq
        %v257 = vshrl.u32 %v256, 7
        %v258 = vsub.s32 1, %v257
        %v259 = vrot.slane %v235, %v258
        %vm260 = vcmp.eq.s32.totalorder %v181, %v239
        %vm261 = vcmp.eq.s32.totalorder %v181, %v243
        %vm262 = vcmp.eq.s32.totalorder %v182, %v239
        %vm263 = vcmp.eq.s32.totalorder %v182, %v243
        %vm264 = vcmp.eq.s32.totalorder %v183, %v239
        %vm265 = vcmp.eq.s32.totalorder %v183, %v243
        %vm266 = vcmp.eq.s32.totalorder %v184, %v239
        %vm267 = vcmp.eq.s32.totalorder %v184, %v243
        %vm268 = vcmp.eq.s32.totalorder %v185, %v239
        %vm269 = vcmp.eq.s32.totalorder %v185, %v243
        %vm270 = vcmp.eq.s32.totalorder %v186, %v239
        %vm271 = vcmp.eq.s32.totalorder %v186, %v243
        %vm272 = vcmp.eq.s32.totalorder %v187, %v239
        %vm273 = vcmp.eq.s32.totalorder %v187, %v243
        %vm274 = vcmp.eq.s32.totalorder %v188, %v239
        %vm275 = vcmp.eq.s32.totalorder %v188, %v243
        %vm276 = vcmp.eq.s32.totalorder %v189, %v239
        %vm277 = vcmp.eq.s32.totalorder %v189, %v243
        %vm278 = vcmp.eq.s32.totalorder %v190, %v239
        %vm279 = vcmp.eq.s32.totalorder %v190, %v243
        %vm280 = vcmp.eq.s32.totalorder %v191, %v239
        %vm281 = vcmp.eq.s32.totalorder %v191, %v243
        %vm282 = vcmp.eq.s32.totalorder %v192, %v239
        %vm283 = vcmp.eq.s32.totalorder %v192, %v243
        %vm284 = vcmp.eq.s32.totalorder %v193, %v239
        %vm285 = vcmp.eq.s32.totalorder %v193, %v243
        %vm286 = vcmp.eq.s32.totalorder %v194, %v239
        %vm287 = vcmp.eq.s32.totalorder %v194, %v243
        %vm288 = vcmp.eq.s32.totalorder %v195, %v239
        %vm289 = vcmp.eq.s32.totalorder %v195, %v243
        %vm290 = vcmp.eq.s32.totalorder %v196, %v239
        %vm291 = vcmp.eq.s32.totalorder %v196, %v243
        %vm292 = vcmp.eq.s32.totalorder %v197, %v239
        %vm293 = vcmp.eq.s32.totalorder %v197, %v243
        %vm294 = vcmp.eq.s32.totalorder %v198, %v239
        %vm295 = vcmp.eq.s32.totalorder %v198, %v243
        %vm296 = vcmp.eq.s32.totalorder %v199, %v239
        %vm297 = vcmp.eq.s32.totalorder %v199, %v243
        %vm298 = vcmp.eq.s32.totalorder %v200, %v239
        %vm299 = vcmp.eq.s32.totalorder %v200, %v243
        %vm300 = vcmp.eq.s32.totalorder %v201, %v239
        %vm301 = vcmp.eq.s32.totalorder %v201, %v243
        %vm302 = vcmp.eq.s32.totalorder %v202, %v239
        %vm303 = vcmp.eq.s32.totalorder %v202, %v243
        %vm304 = vcmp.eq.s32.totalorder %v203, %v239
        %vm305 = vcmp.eq.s32.totalorder %v203, %v243
        %vm306 = vcmp.eq.s32.totalorder %v204, %v239
        %vm307 = vcmp.eq.s32.totalorder %v204, %v243
        %vm308 = vcmp.eq.s32.totalorder %v205, %v239
        %vm309 = vcmp.eq.s32.totalorder %v205, %v243
        %vm310 = vcmp.eq.s32.totalorder %v206, %v239
        %vm311 = vcmp.eq.s32.totalorder %v206, %v243
        %vm312 = vcmp.eq.s32.totalorder %v207, %v239
        %vm313 = vcmp.eq.s32.totalorder %v207, %v243
        %vm314 = vcmp.eq.s32.totalorder %v208, %v239
        %vm315 = vcmp.eq.s32.totalorder %v208, %v243
        %vm316 = vcmp.eq.s32.totalorder %v209, %v239
        %vm317 = vcmp.eq.s32.totalorder %v209, %v243
        %vm318 = vcmp.eq.s32.totalorder %v210, %v239
        %vm319 = vcmp.eq.s32.totalorder %v210, %v243
        %vm320 = vcmp.eq.s32.totalorder %v211, %v239
        %vm321 = vcmp.eq.s32.totalorder %v211, %v243
        %vm322 = vcmp.eq.s32.totalorder %v212, %v239
        %vm323 = vcmp.eq.s32.totalorder %v212, %v243
        %vm324 = vcmp.eq.s32.totalorder %v181, %v247
        %vm325 = vcmp.eq.s32.totalorder %v181, %v251
        %vm326 = vcmp.eq.s32.totalorder %v182, %v247
        %vm327 = vcmp.eq.s32.totalorder %v182, %v251
        %vm328 = vcmp.eq.s32.totalorder %v183, %v247
        %vm329 = vcmp.eq.s32.totalorder %v183, %v251
        %vm330 = vcmp.eq.s32.totalorder %v184, %v247
        %vm331 = vcmp.eq.s32.totalorder %v184, %v251
        %vm332 = vcmp.eq.s32.totalorder %v185, %v247
        %vm333 = vcmp.eq.s32.totalorder %v185, %v251
        %vm334 = vcmp.eq.s32.totalorder %v186, %v247
        %vm335 = vcmp.eq.s32.totalorder %v186, %v251
        %vm336 = vcmp.eq.s32.totalorder %v187, %v247
        %vm337 = vcmp.eq.s32.totalorder %v187, %v251
        %vm338 = vcmp.eq.s32.totalorder %v188, %v247
        %vm339 = vcmp.eq.s32.totalorder %v188, %v251
        %vm340 = vcmp.eq.s32.totalorder %v189, %v247
        %vm341 = vcmp.eq.s32.totalorder %v189, %v251
        %vm342 = vcmp.eq.s32.totalorder %v190, %v247
        %vm343 = vcmp.eq.s32.totalorder %v190, %v251
        %vm344 = vcmp.eq.s32.totalorder %v191, %v247
        %vm345 = vcmp.eq.s32.totalorder %v191, %v251
        %vm346 = vcmp.eq.s32.totalorder %v192, %v247
        %vm347 = vcmp.eq.s32.totalorder %v192, %v251
        %vm348 = vcmp.eq.s32.totalorder %v193, %v247
        %vm349 = vcmp.eq.s32.totalorder %v193, %v251
        %vm350 = vcmp.eq.s32.totalorder %v194, %v247
        %vm351 = vcmp.eq.s32.totalorder %v194, %v251
        %vm352 = vcmp.eq.s32.totalorder %v195, %v247
        %vm353 = vcmp.eq.s32.totalorder %v195, %v251
        %vm354 = vcmp.eq.s32.totalorder %v196, %v247
        %vm355 = vcmp.eq.s32.totalorder %v196, %v251
        %vm356 = vcmp.eq.s32.totalorder %v197, %v247
        %vm357 = vcmp.eq.s32.totalorder %v197, %v251
        %vm358 = vcmp.eq.s32.totalorder %v198, %v247
        %vm359 = vcmp.eq.s32.totalorder %v198, %v251
        %vm360 = vcmp.eq.s32.totalorder %v199, %v247
        %vm361 = vcmp.eq.s32.totalorder %v199, %v251
        %vm362 = vcmp.eq.s32.totalorder %v200, %v247
        %vm363 = vcmp.eq.s32.totalorder %v200, %v251
        %vm364 = vcmp.eq.s32.totalorder %v201, %v247
        %vm365 = vcmp.eq.s32.totalorder %v201, %v251
        %vm366 = vcmp.eq.s32.totalorder %v202, %v247
        %vm367 = vcmp.eq.s32.totalorder %v202, %v251
        %vm368 = vcmp.eq.s32.totalorder %v203, %v247
        %vm369 = vcmp.eq.s32.totalorder %v203, %v251
        %vm370 = vcmp.eq.s32.totalorder %v204, %v247
        %vm371 = vcmp.eq.s32.totalorder %v204, %v251
        %vm372 = vcmp.eq.s32.totalorder %v205, %v247
        %vm373 = vcmp.eq.s32.totalorder %v205, %v251
        %vm374 = vcmp.eq.s32.totalorder %v206, %v247
        %vm375 = vcmp.eq.s32.totalorder %v206, %v251
        %vm376 = vcmp.eq.s32.totalorder %v207, %v247
        %vm377 = vcmp.eq.s32.totalorder %v207, %v251
        %vm378 = vcmp.eq.s32.totalorder %v208, %v247
        %vm379 = vcmp.eq.s32.totalorder %v208, %v251
        %vm380 = vcmp.eq.s32.totalorder %v209, %v247
        %vm381 = vcmp.eq.s32.totalorder %v209, %v251
        %vm382 = vcmp.eq.s32.totalorder %v210, %v247
        %vm383 = vcmp.eq.s32.totalorder %v210, %v251
        %vm384 = vcmp.eq.s32.totalorder %v211, %v247
        %vm385 = vcmp.eq.s32.totalorder %v211, %v251
        %vm386 = vcmp.eq.s32.totalorder %v212, %v247
        %vm387 = vcmp.eq.s32.totalorder %v212, %v251
        %vm388 = vcmp.eq.s32.totalorder %v181, %v255
        %vm389 = vcmp.eq.s32.totalorder %v181, %v259
        %vm390 = vcmp.eq.s32.totalorder %v182, %v255
        %vm391 = vcmp.eq.s32.totalorder %v182, %v259
        %vm392 = vcmp.eq.s32.totalorder %v183, %v255
        %vm393 = vcmp.eq.s32.totalorder %v183, %v259
        %vm394 = vcmp.eq.s32.totalorder %v184, %v255
        %vm395 = vcmp.eq.s32.totalorder %v184, %v259
        %vm396 = vcmp.eq.s32.totalorder %v185, %v255
        %vm397 = vcmp.eq.s32.totalorder %v185, %v259
        %vm398 = vcmp.eq.s32.totalorder %v186, %v255
        %vm399 = vcmp.eq.s32.totalorder %v186, %v259
        %vm400 = vcmp.eq.s32.totalorder %v187, %v255
        %vm401 = vcmp.eq.s32.totalorder %v187, %v259
        %vm402 = vcmp.eq.s32.totalorder %v188, %v255
        %vm403 = vcmp.eq.s32.totalorder %v188, %v259
        %vm404 = vcmp.eq.s32.totalorder %v189, %v255
        %vm405 = vcmp.eq.s32.totalorder %v189, %v259
        %vm406 = vcmp.eq.s32.totalorder %v190, %v255
        %vm407 = vcmp.eq.s32.totalorder %v190, %v259
        %vm408 = vcmp.eq.s32.totalorder %v191, %v255
        %vm409 = vcmp.eq.s32.totalorder %v191, %v259
        %vm410 = vcmp.eq.s32.totalorder %v192, %v255
        %vm411 = vcmp.eq.s32.totalorder %v192, %v259
        %vm412 = vcmp.eq.s32.totalorder %v193, %v255
        %vm413 = vcmp.eq.s32.totalorder %v193, %v259
        %vm414 = vcmp.eq.s32.totalorder %v194, %v255
        %vm415 = vcmp.eq.s32.totalorder %v194, %v259
        %vm416 = vcmp.eq.s32.totalorder %v195, %v255
        %vm417 = vcmp.eq.s32.totalorder %v195, %v259
        %vm418 = vcmp.eq.s32.totalorder %v196, %v255
        %vm419 = vcmp.eq.s32.totalorder %v196, %v259
        %vm420 = vcmp.eq.s32.totalorder %v197, %v255
        %vm421 = vcmp.eq.s32.totalorder %v197, %v259
        %vm422 = vcmp.eq.s32.totalorder %v198, %v255
        %vm423 = vcmp.eq.s32.totalorder %v198, %v259
        %vm424 = vcmp.eq.s32.totalorder %v199, %v255
        %vm425 = vcmp.eq.s32.totalorder %v199, %v259
        %vm426 = vcmp.eq.s32.totalorder %v200, %v255
        %vm427 = vcmp.eq.s32.totalorder %v200, %v259
        %vm428 = vcmp.eq.s32.totalorder %v201, %v255
        %vm429 = vcmp.eq.s32.totalorder %v201, %v259
        %vm430 = vcmp.eq.s32.totalorder %v202, %v255
        %vm431 = vcmp.eq.s32.totalorder %v202, %v259
        %vm432 = vcmp.eq.s32.totalorder %v203, %v255
        %vm433 = vcmp.eq.s32.totalorder %v203, %v259
        %vm434 = vcmp.eq.s32.totalorder %v204, %v255
        %vm435 = vcmp.eq.s32.totalorder %v204, %v259
        %vm436 = vcmp.eq.s32.totalorder %v205, %v255
        %vm437 = vcmp.eq.s32.totalorder %v205, %v259
        %vm438 = vcmp.eq.s32.totalorder %v206, %v255
        %vm439 = vcmp.eq.s32.totalorder %v206, %v259
        %vm440 = vcmp.eq.s32.totalorder %v207, %v255
        %vm441 = vcmp.eq.s32.totalorder %v207, %v259
        %vm442 = vcmp.eq.s32.totalorder %v208, %v255
        %vm443 = vcmp.eq.s32.totalorder %v208, %v259
        %vm444 = vcmp.eq.s32.totalorder %v209, %v255
        %vm445 = vcmp.eq.s32.totalorder %v209, %v259
        %vm446 = vcmp.eq.s32.totalorder %v210, %v255
        %vm447 = vcmp.eq.s32.totalorder %v210, %v259
        %vm448 = vcmp.eq.s32.totalorder %v211, %v255
        %vm449 = vcmp.eq.s32.totalorder %v211, %v259
        %vm450 = vcmp.eq.s32.totalorder %v212, %v255
        %vm451 = vcmp.eq.s32.totalorder %v212, %v259
        %v452 = vsel %vm260, 1, 0
        %v453 = vsel %vm261, 1, 0
        %v454 = vsel %vm262, 1, 0
        %v455 = vsel %vm263, 1, 0
        %v456 = vsel %vm264, 1, 0
        %v457 = vsel %vm265, 1, 0
        %v458 = vsel %vm266, 1, 0
        %v459 = vsel %vm267, 1, 0
        %v460 = vsel %vm268, 1, 0
        %v461 = vsel %vm269, 1, 0
        %v462 = vsel %vm270, 1, 0
        %v463 = vsel %vm271, 1, 0
        %v464 = vsel %vm272, 1, 0
        %v465 = vsel %vm273, 1, 0
        %v466 = vsel %vm274, 1, 0
        %v467 = vsel %vm275, 1, 0
        %v468 = vsel %vm276, 1, 0
        %v469 = vsel %vm277, 1, 0
        %v470 = vsel %vm278, 1, 0
        %v471 = vsel %vm279, 1, 0
        %v472 = vsel %vm280, 1, 0
        %v473 = vsel %vm281, 1, 0
        %v474 = vsel %vm282, 1, 0
        %v475 = vsel %vm283, 1, 0
        %v476 = vsel %vm284, 1, 0
        %v477 = vsel %vm285, 1, 0
        %v478 = vsel %vm286, 1, 0
        %v479 = vsel %vm287, 1, 0
        %v480 = vsel %vm288, 1, 0
        %v481 = vsel %vm289, 1, 0
        %v482 = vsel %vm290, 1, 0
        %v483 = vsel %vm291, 1, 0
        %v484 = vsel %vm292, 1, 0
        %v485 = vsel %vm293, 1, 0
        %v486 = vsel %vm294, 1, 0
        %v487 = vsel %vm295, 1, 0
        %v488 = vsel %vm296, 1, 0
        %v489 = vsel %vm297, 1, 0
        %v490 = vsel %vm298, 1, 0
        %v491 = vsel %vm299, 1, 0
        %v492 = vsel %vm300, 1, 0
        %v493 = vsel %vm301, 1, 0
        %v494 = vsel %vm302, 1, 0
        %v495 = vsel %vm303, 1, 0
        %v496 = vsel %vm304, 1, 0
        %v497 = vsel %vm305, 1, 0
        %v498 = vsel %vm306, 1, 0
        %v499 = vsel %vm307, 1, 0
        %v500 = vsel %vm308, 1, 0
        %v501 = vsel %vm309, 1, 0
        %v502 = vsel %vm310, 1, 0
        %v503 = vsel %vm311, 1, 0
        %v504 = vsel %vm312, 1, 0
        %v505 = vsel %vm313, 1, 0
        %v506 = vsel %vm314, 1, 0
        %v507 = vsel %vm315, 1, 0
        %v508 = vsel %vm316, 1, 0
        %v509 = vsel %vm317, 1, 0
        %v510 = vsel %vm318, 1, 0
        %v511 = vsel %vm319, 1, 0
        %v512 = vsel %vm320, 1, 0
        %v513 = vsel %vm321, 1, 0
        %v514 = vsel %vm322, 1, 0
        %v515 = vsel %vm323, 1, 0
        %v516 = vsel %vm324, 1, 0
        %v517 = vsel %vm325, 1, 0
        %v518 = vsel %vm326, 1, 0
        %v519 = vsel %vm327, 1, 0
        %v520 = vsel %vm328, 1, 0
        %v521 = vsel %vm329, 1, 0
        %v522 = vsel %vm330, 1, 0
        %v523 = vsel %vm331, 1, 0
        %v524 = vsel %vm332, 1, 0
        %v525 = vsel %vm333, 1, 0
        %v526 = vsel %vm334, 1, 0
        %v527 = vsel %vm335, 1, 0
        %v528 = vsel %vm336, 1, 0
        %v529 = vsel %vm337, 1, 0
        %v530 = vsel %vm338, 1, 0
        %v531 = vsel %vm339, 1, 0
        %v532 = vsel %vm340, 1, 0
        %v533 = vsel %vm341, 1, 0
        %v534 = vsel %vm342, 1, 0
        %v535 = vsel %vm343, 1, 0
        %v536 = vsel %vm344, 1, 0
        %v537 = vsel %vm345, 1, 0
        %v538 = vsel %vm346, 1, 0
        %v539 = vsel %vm347, 1, 0
        %v540 = vsel %vm348, 1, 0
        %v541 = vsel %vm349, 1, 0
        %v542 = vsel %vm350, 1, 0
        %v543 = vsel %vm351, 1, 0
        %v544 = vsel %vm352, 1, 0
        %v545 = vsel %vm353, 1, 0
        %v546 = vsel %vm354, 1, 0
        %v547 = vsel %vm355, 1, 0
        %v548 = vsel %vm356, 1, 0
        %v549 = vsel %vm357, 1, 0
        %v550 = vsel %vm358, 1, 0
        %v551 = vsel %vm359, 1, 0
        %v552 = vsel %vm360, 1, 0
        %v553 = vsel %vm361, 1, 0
        %v554 = vsel %vm362, 1, 0
        %v555 = vsel %vm363, 1, 0
        %v556 = vsel %vm364, 1, 0
        %v557 = vsel %vm365, 1, 0
        %v558 = vsel %vm366, 1, 0
        %v559 = vsel %vm367, 1, 0
        %v560 = vsel %vm368, 1, 0
        %v561 = vsel %vm369, 1, 0
        %v562 = vsel %vm370, 1, 0
        %v563 = vsel %vm371, 1, 0
        %v564 = vsel %vm372, 1, 0
        %v565 = vsel %vm373, 1, 0
        %v566 = vsel %vm374, 1, 0
        %v567 = vsel %vm375, 1, 0
        %v568 = vsel %vm376, 1, 0
        %v569 = vsel %vm377, 1, 0
        %v570 = vsel %vm378, 1, 0
        %v571 = vsel %vm379, 1, 0
        %v572 = vsel %vm380, 1, 0
        %v573 = vsel %vm381, 1, 0
        %v574 = vsel %vm382, 1, 0
        %v575 = vsel %vm383, 1, 0
        %v576 = vsel %vm384, 1, 0
        %v577 = vsel %vm385, 1, 0
        %v578 = vsel %vm386, 1, 0
        %v579 = vsel %vm387, 1, 0
        %v580 = vsel %vm388, 1, 0
        %v581 = vsel %vm389, 1, 0
        %v582 = vsel %vm390, 1, 0
        %v583 = vsel %vm391, 1, 0
        %v584 = vsel %vm392, 1, 0
        %v585 = vsel %vm393, 1, 0
        %v586 = vsel %vm394, 1, 0
        %v587 = vsel %vm395, 1, 0
        %v588 = vsel %vm396, 1, 0
        %v589 = vsel %vm397, 1, 0
        %v590 = vsel %vm398, 1, 0
        %v591 = vsel %vm399, 1, 0
        %v592 = vsel %vm400, 1, 0
        %v593 = vsel %vm401, 1, 0
        %v594 = vsel %vm402, 1, 0
        %v595 = vsel %vm403, 1, 0
        %v596 = vsel %vm404, 1, 0
        %v597 = vsel %vm405, 1, 0
        %v598 = vsel %vm406, 1, 0
        %v599 = vsel %vm407, 1, 0
        %v600 = vsel %vm408, 1, 0
        %v601 = vsel %vm409, 1, 0
        %v602 = vsel %vm410, 1, 0
        %v603 = vsel %vm411, 1, 0
        %v604 = vsel %vm412, 1, 0
        %v605 = vsel %vm413, 1, 0
        %v606 = vsel %vm414, 1, 0
        %v607 = vsel %vm415, 1, 0
        %v608 = vsel %vm416, 1, 0
        %v609 = vsel %vm417, 1, 0
        %v610 = vsel %vm418, 1, 0
        %v611 = vsel %vm419, 1, 0
        %v612 = vsel %vm420, 1, 0
        %v613 = vsel %vm421, 1, 0
        %v614 = vsel %vm422, 1, 0
        %v615 = vsel %vm423, 1, 0
        %v616 = vsel %vm424, 1, 0
        %v617 = vsel %vm425, 1, 0
        %v618 = vsel %vm426, 1, 0
        %v619 = vsel %vm427, 1, 0
        %v620 = vsel %vm428, 1, 0
        %v621 = vsel %vm429, 1, 0
        %v622 = vsel %vm430, 1, 0
        %v623 = vsel %vm431, 1, 0
        %v624 = vsel %vm432, 1, 0
        %v625 = vsel %vm433, 1, 0
        %v626 = vsel %vm434, 1, 0
        %v627 = vsel %vm435, 1, 0
        %v628 = vsel %vm436, 1, 0
        %v629 = vsel %vm437, 1, 0
        %v630 = vsel %vm438, 1, 0
        %v631 = vsel %vm439, 1, 0
        %v632 = vsel %vm440, 1, 0
        %v633 = vsel %vm441, 1, 0
        %v634 = vsel %vm442, 1, 0
        %v635 = vsel %vm443, 1, 0
        %v636 = vsel %vm444, 1, 0
        %v637 = vsel %vm445, 1, 0
        %v638 = vsel %vm446, 1, 0
        %v639 = vsel %vm447, 1, 0
        %v640 = vsel %vm448, 1, 0
        %v641 = vsel %vm449, 1, 0
        %v642 = vsel %vm450, 1, 0
        %v643 = vsel %vm451, 1, 0
        %v644 = vcvt.s32.f32 %v452
        %v645 = vcvt.s32.f32 %v453
        %v646 = vcvt.s32.f32 %v454
        %v647 = vcvt.s32.f32 %v455
        %v648 = vcvt.s32.f32 %v456
        %v649 = vcvt.s32.f32 %v457
        %v650 = vcvt.s32.f32 %v458
        %v651 = vcvt.s32.f32 %v459
        %v652 = vcvt.s32.f32 %v460
        %v653 = vcvt.s32.f32 %v461
        %v654 = vcvt.s32.f32 %v462
        %v655 = vcvt.s32.f32 %v463
        %v656 = vcvt.s32.f32 %v464
        %v657 = vcvt.s32.f32 %v465
        %v658 = vcvt.s32.f32 %v466
        %v659 = vcvt.s32.f32 %v467
        %v660 = vcvt.s32.f32 %v468
        %v661 = vcvt.s32.f32 %v469
        %v662 = vcvt.s32.f32 %v470
        %v663 = vcvt.s32.f32 %v471
        %v664 = vcvt.s32.f32 %v472
        %v665 = vcvt.s32.f32 %v473
        %v666 = vcvt.s32.f32 %v474
        %v667 = vcvt.s32.f32 %v475
        %v668 = vcvt.s32.f32 %v476
        %v669 = vcvt.s32.f32 %v477
        %v670 = vcvt.s32.f32 %v478
        %v671 = vcvt.s32.f32 %v479
        %v672 = vcvt.s32.f32 %v480
        %v673 = vcvt.s32.f32 %v481
        %v674 = vcvt.s32.f32 %v482
        %v675 = vcvt.s32.f32 %v483
        %v676 = vcvt.s32.f32 %v484
        %v677 = vcvt.s32.f32 %v485
        %v678 = vcvt.s32.f32 %v486
        %v679 = vcvt.s32.f32 %v487
        %v680 = vcvt.s32.f32 %v488
        %v681 = vcvt.s32.f32 %v489
        %v682 = vcvt.s32.f32 %v490
        %v683 = vcvt.s32.f32 %v491
        %v684 = vcvt.s32.f32 %v492
        %v685 = vcvt.s32.f32 %v493
        %v686 = vcvt.s32.f32 %v494
        %v687 = vcvt.s32.f32 %v495
        %v688 = vcvt.s32.f32 %v496
        %v689 = vcvt.s32.f32 %v497
        %v690 = vcvt.s32.f32 %v498
        %v691 = vcvt.s32.f32 %v499
        %v692 = vcvt.s32.f32 %v500
        %v693 = vcvt.s32.f32 %v501
        %v694 = vcvt.s32.f32 %v502
        %v695 = vcvt.s32.f32 %v503
        %v696 = vcvt.s32.f32 %v504
        %v697 = vcvt.s32.f32 %v505
        %v698 = vcvt.s32.f32 %v506
        %v699 = vcvt.s32.f32 %v507
        %v700 = vcvt.s32.f32 %v508
        %v701 = vcvt.s32.f32 %v509
        %v702 = vcvt.s32.f32 %v510
        %v703 = vcvt.s32.f32 %v511
        %v704 = vcvt.s32.f32 %v512
        %v705 = vcvt.s32.f32 %v513
        %v706 = vcvt.s32.f32 %v514
        %v707 = vcvt.s32.f32 %v515
        %v708 = vcvt.s32.f32 %v516
        %v709 = vcvt.s32.f32 %v517
        %v710 = vcvt.s32.f32 %v518
        %v711 = vcvt.s32.f32 %v519
        %v712 = vcvt.s32.f32 %v520
        %v713 = vcvt.s32.f32 %v521
        %v714 = vcvt.s32.f32 %v522
        %v715 = vcvt.s32.f32 %v523
        %v716 = vcvt.s32.f32 %v524
        %v717 = vcvt.s32.f32 %v525
        %v718 = vcvt.s32.f32 %v526
        %v719 = vcvt.s32.f32 %v527
        %v720 = vcvt.s32.f32 %v528
        %v721 = vcvt.s32.f32 %v529
        %v722 = vcvt.s32.f32 %v530
        %v723 = vcvt.s32.f32 %v531
        %v724 = vcvt.s32.f32 %v532
        %v725 = vcvt.s32.f32 %v533
        %v726 = vcvt.s32.f32 %v534
        %v727 = vcvt.s32.f32 %v535
        %v728 = vcvt.s32.f32 %v536
        %v729 = vcvt.s32.f32 %v537
        %v730 = vcvt.s32.f32 %v538
        %v731 = vcvt.s32.f32 %v539
        %v732 = vcvt.s32.f32 %v540
        %v733 = vcvt.s32.f32 %v541
        %v734 = vcvt.s32.f32 %v542
        %v735 = vcvt.s32.f32 %v543
        %v736 = vcvt.s32.f32 %v544
        %v737 = vcvt.s32.f32 %v545
        %v738 = vcvt.s32.f32 %v546
        %v739 = vcvt.s32.f32 %v547
        %v740 = vcvt.s32.f32 %v548
        %v741 = vcvt.s32.f32 %v549
        %v742 = vcvt.s32.f32 %v550
        %v743 = vcvt.s32.f32 %v551
        %v744 = vcvt.s32.f32 %v552
        %v745 = vcvt.s32.f32 %v553
        %v746 = vcvt.s32.f32 %v554
        %v747 = vcvt.s32.f32 %v555
        %v748 = vcvt.s32.f32 %v556
        %v749 = vcvt.s32.f32 %v557
        %v750 = vcvt.s32.f32 %v558
        %v751 = vcvt.s32.f32 %v559
        %v752 = vcvt.s32.f32 %v560
        %v753 = vcvt.s32.f32 %v561
        %v754 = vcvt.s32.f32 %v562
        %v755 = vcvt.s32.f32 %v563
        %v756 = vcvt.s32.f32 %v564
        %v757 = vcvt.s32.f32 %v565
        %v758 = vcvt.s32.f32 %v566
        %v759 = vcvt.s32.f32 %v567
        %v760 = vcvt.s32.f32 %v568
        %v761 = vcvt.s32.f32 %v569
        %v762 = vcvt.s32.f32 %v570
        %v763 = vcvt.s32.f32 %v571
        %v764 = vcvt.s32.f32 %v572
        %v765 = vcvt.s32.f32 %v573
        %v766 = vcvt.s32.f32 %v574
        %v767 = vcvt.s32.f32 %v575
        %v768 = vcvt.s32.f32 %v576
        %v769 = vcvt.s32.f32 %v577
        %v770 = vcvt.s32.f32 %v578
        %v771 = vcvt.s32.f32 %v579
        %v772 = vcvt.s32.f32 %v580
        %v773 = vcvt.s32.f32 %v581
        %v774 = vcvt.s32.f32 %v582
        %v775 = vcvt.s32.f32 %v583
        %v776 = vcvt.s32.f32 %v584
        %v777 = vcvt.s32.f32 %v585
        %v778 = vcvt.s32.f32 %v586
        %v779 = vcvt.s32.f32 %v587
        %v780 = vcvt.s32.f32 %v588
        %v781 = vcvt.s32.f32 %v589
        %v782 = vcvt.s32.f32 %v590
        %v783 = vcvt.s32.f32 %v591
        %v784 = vcvt.s32.f32 %v592
        %v785 = vcvt.s32.f32 %v593
        %v786 = vcvt.s32.f32 %v594
        %v787 = vcvt.s32.f32 %v595
        %v788 = vcvt.s32.f32 %v596
        %v789 = vcvt.s32.f32 %v597
        %v790 = vcvt.s32.f32 %v598
        %v791 = vcvt.s32.f32 %v599
        %v792 = vcvt.s32.f32 %v600
        %v793 = vcvt.s32.f32 %v601
        %v794 = vcvt.s32.f32 %v602
        %v795 = vcvt.s32.f32 %v603
        %v796 = vcvt.s32.f32 %v604
        %v797 = vcvt.s32.f32 %v605
        %v798 = vcvt.s32.f32 %v606
        %v799 = vcvt.s32.f32 %v607
        %v800 = vcvt.s32.f32 %v608
        %v801 = vcvt.s32.f32 %v609
        %v802 = vcvt.s32.f32 %v610
        %v803 = vcvt.s32.f32 %v611
        %v804 = vcvt.s32.f32 %v612
        %v805 = vcvt.s32.f32 %v613
        %v806 = vcvt.s32.f32 %v614
        %v807 = vcvt.s32.f32 %v615
        %v808 = vcvt.s32.f32 %v616
        %v809 = vcvt.s32.f32 %v617
        %v810 = vcvt.s32.f32 %v618
        %v811 = vcvt.s32.f32 %v619
        %v812 = vcvt.s32.f32 %v620
        %v813 = vcvt.s32.f32 %v621
        %v814 = vcvt.s32.f32 %v622
        %v815 = vcvt.s32.f32 %v623
        %v816 = vcvt.s32.f32 %v624
        %v817 = vcvt.s32.f32 %v625
        %v818 = vcvt.s32.f32 %v626
        %v819 = vcvt.s32.f32 %v627
        %v820 = vcvt.s32.f32 %v628
        %v821 = vcvt.s32.f32 %v629
        %v822 = vcvt.s32.f32 %v630
        %v823 = vcvt.s32.f32 %v631
        %v824 = vcvt.s32.f32 %v632
        %v825 = vcvt.s32.f32 %v633
        %v826 = vcvt.s32.f32 %v634
        %v827 = vcvt.s32.f32 %v635
        %v828 = vcvt.s32.f32 %v636
        %v829 = vcvt.s32.f32 %v637
        %v830 = vcvt.s32.f32 %v638
        %v831 = vcvt.s32.f32 %v639
        %v832 = vcvt.s32.f32 %v640
        %v833 = vcvt.s32.f32 %v641
        %v834 = vcvt.s32.f32 %v642
        %v835 = vcvt.s32.f32 %v643
        %v836 = vpack.c.bf16 %v646, %v644
        %v837 = vpack.c.bf16 %v647, %v645
        %v838 = vpack.c.bf16 %v650, %v648
        %v839 = vpack.c.bf16 %v651, %v649
        %v840 = vpack.c.bf16 %v654, %v652
        %v841 = vpack.c.bf16 %v655, %v653
        %v842 = vpack.c.bf16 %v658, %v656
        %v843 = vpack.c.bf16 %v659, %v657
        %v844 = vpack.c.bf16 %v662, %v660
        %v845 = vpack.c.bf16 %v663, %v661
        %v846 = vpack.c.bf16 %v666, %v664
        %v847 = vpack.c.bf16 %v667, %v665
        %v848 = vpack.c.bf16 %v670, %v668
        %v849 = vpack.c.bf16 %v671, %v669
        %v850 = vpack.c.bf16 %v674, %v672
        %v851 = vpack.c.bf16 %v675, %v673
        %v852 = vpack.c.bf16 %v678, %v676
        %v853 = vpack.c.bf16 %v679, %v677
        %v854 = vpack.c.bf16 %v682, %v680
        %v855 = vpack.c.bf16 %v683, %v681
        %v856 = vpack.c.bf16 %v686, %v684
        %v857 = vpack.c.bf16 %v687, %v685
        %v858 = vpack.c.bf16 %v690, %v688
        %v859 = vpack.c.bf16 %v691, %v689
        %v860 = vpack.c.bf16 %v694, %v692
        %v861 = vpack.c.bf16 %v695, %v693
        %v862 = vpack.c.bf16 %v698, %v696
        %v863 = vpack.c.bf16 %v699, %v697
        %v864 = vpack.c.bf16 %v702, %v700
        %v865 = vpack.c.bf16 %v703, %v701
        %v866 = vpack.c.bf16 %v706, %v704
        %v867 = vpack.c.bf16 %v707, %v705
        %v868 = vpack.c.bf16 %v710, %v708
        %v869 = vpack.c.bf16 %v711, %v709
        %v870 = vpack.c.bf16 %v714, %v712
        %v871 = vpack.c.bf16 %v715, %v713
        %v872 = vpack.c.bf16 %v718, %v716
        %v873 = vpack.c.bf16 %v719, %v717
        %v874 = vpack.c.bf16 %v722, %v720
        %v875 = vpack.c.bf16 %v723, %v721
        %v876 = vpack.c.bf16 %v726, %v724
        %v877 = vpack.c.bf16 %v727, %v725
        %v878 = vpack.c.bf16 %v730, %v728
        %v879 = vpack.c.bf16 %v731, %v729
        %v880 = vpack.c.bf16 %v734, %v732
        %v881 = vpack.c.bf16 %v735, %v733
        %v882 = vpack.c.bf16 %v738, %v736
        %v883 = vpack.c.bf16 %v739, %v737
        %v884 = vpack.c.bf16 %v742, %v740
        %v885 = vpack.c.bf16 %v743, %v741
        %v886 = vpack.c.bf16 %v746, %v744
        %v887 = vpack.c.bf16 %v747, %v745
        %v888 = vpack.c.bf16 %v750, %v748
        %v889 = vpack.c.bf16 %v751, %v749
        %v890 = vpack.c.bf16 %v754, %v752
        %v891 = vpack.c.bf16 %v755, %v753
        %v892 = vpack.c.bf16 %v758, %v756
        %v893 = vpack.c.bf16 %v759, %v757
        %v894 = vpack.c.bf16 %v762, %v760
        %v895 = vpack.c.bf16 %v763, %v761
        %v896 = vpack.c.bf16 %v766, %v764
        %v897 = vpack.c.bf16 %v767, %v765
        %v898 = vpack.c.bf16 %v770, %v768
        %v899 = vpack.c.bf16 %v771, %v769
        %v900 = vpack.c.bf16 %v774, %v772
        %v901 = vpack.c.bf16 %v775, %v773
        %v902 = vpack.c.bf16 %v778, %v776
        %v903 = vpack.c.bf16 %v779, %v777
        %v904 = vpack.c.bf16 %v782, %v780
        %v905 = vpack.c.bf16 %v783, %v781
        %v906 = vpack.c.bf16 %v786, %v784
        %v907 = vpack.c.bf16 %v787, %v785
        %v908 = vpack.c.bf16 %v790, %v788
        %v909 = vpack.c.bf16 %v791, %v789
        %v910 = vpack.c.bf16 %v794, %v792
        %v911 = vpack.c.bf16 %v795, %v793
        %v912 = vpack.c.bf16 %v798, %v796
        %v913 = vpack.c.bf16 %v799, %v797
        %v914 = vpack.c.bf16 %v802, %v800
        %v915 = vpack.c.bf16 %v803, %v801
        %v916 = vpack.c.bf16 %v806, %v804
        %v917 = vpack.c.bf16 %v807, %v805
        %v918 = vpack.c.bf16 %v810, %v808
        %v919 = vpack.c.bf16 %v811, %v809
        %v920 = vpack.c.bf16 %v814, %v812
        %v921 = vpack.c.bf16 %v815, %v813
        %v922 = vpack.c.bf16 %v818, %v816
        %v923 = vpack.c.bf16 %v819, %v817
        %v924 = vpack.c.bf16 %v822, %v820
        %v925 = vpack.c.bf16 %v823, %v821
        %v926 = vpack.c.bf16 %v826, %v824
        %v927 = vpack.c.bf16 %v827, %v825
        %v928 = vpack.c.bf16 %v830, %v828
        %v929 = vpack.c.bf16 %v831, %v829
        %v930 = vpack.c.bf16 %v834, %v832
        %v931 = vpack.c.bf16 %v835, %v833
        %v932 = vld [vmem:[#allocation5] sm:$0xff]
        %v933 = vld [vmem:[#allocation5 + $0x8] sm:$0xff]
        %v934 = vld [vmem:[#allocation5 + $0x10] sm:$0xff]
        %v935 = vld [vmem:[#allocation5 + $0x18] sm:$0xff]
        %v936 = vld [vmem:[#allocation5 + $0x20] sm:$0xff]
        %v937 = vld [vmem:[#allocation5 + $0x28] sm:$0xff]
        %v938 = vld [vmem:[#allocation5 + $0x30] sm:$0xff]
        %v939 = vld [vmem:[#allocation5 + $0x38] sm:$0xff]
        %v940 = vld [vmem:[#allocation5 + $0x40] sm:$0xff]
        %v941 = vld [vmem:[#allocation5 + $0x48] sm:$0xff]
        %v942 = vld [vmem:[#allocation5 + $0x50] sm:$0xff]
        %v943 = vld [vmem:[#allocation5 + $0x58] sm:$0xff]
        %v944 = vld [vmem:[#allocation5 + $0x60] sm:$0xff]
        %v945 = vld [vmem:[#allocation5 + $0x68] sm:$0xff]
        %v946 = vld [vmem:[#allocation5 + $0x70] sm:$0xff]
        %v947 = vld [vmem:[#allocation5 + $0x78] sm:$0xff]
        %v948 = vld [vmem:[#allocation5 + $0x80] sm:$0xff]
        %v949 = vld [vmem:[#allocation5 + $0x88] sm:$0xff]
        %v950 = vld [vmem:[#allocation5 + $0x90] sm:$0xff]
        %v951 = vld [vmem:[#allocation5 + $0x98] sm:$0xff]
        %v952 = vld [vmem:[#allocation5 + $0xa0] sm:$0xff]
        %v953 = vld [vmem:[#allocation5 + $0xa8] sm:$0xff]
        %v954 = vld [vmem:[#allocation5 + $0xb0] sm:$0xff]
        %v955 = vld [vmem:[#allocation5 + $0xb8] sm:$0xff]
        %v980 = vunpack.c.l.b16 %v932
        %v981 = vunpack.c.h.b16 %v932
        %v982 = vunpack.c.l.b16 %v933
        %v983 = vunpack.c.h.b16 %v933
        %v984 = vunpack.c.l.b16 %v934
        %v985 = vunpack.c.h.b16 %v934
        %v986 = vunpack.c.l.b16 %v935
        %v987 = vunpack.c.h.b16 %v935
        %v988 = vunpack.c.l.b16 %v936
        %v989 = vunpack.c.h.b16 %v936
        %v990 = vunpack.c.l.b16 %v937
        %v991 = vunpack.c.h.b16 %v937
        %v992 = vunpack.c.l.b16 %v938
        %v993 = vunpack.c.h.b16 %v938
        %v994 = vunpack.c.l.b16 %v939
        %v995 = vunpack.c.h.b16 %v939
        %v996 = vunpack.c.l.b16 %v940
        %v997 = vunpack.c.h.b16 %v940
        %v998 = vunpack.c.l.b16 %v941
        %v999 = vunpack.c.h.b16 %v941
        %v1000 = vunpack.c.l.b16 %v942
        %v1001 = vunpack.c.h.b16 %v942
        %v1002 = vunpack.c.l.b16 %v943
        %v1003 = vunpack.c.h.b16 %v943
        %v1004 = vunpack.c.l.b16 %v944
        %v1005 = vunpack.c.h.b16 %v944
        %v1006 = vunpack.c.l.b16 %v945
        %v1007 = vunpack.c.h.b16 %v945
        %v1008 = vunpack.c.l.b16 %v946
        %v1009 = vunpack.c.h.b16 %v946
        %v1010 = vunpack.c.l.b16 %v947
        %v1011 = vunpack.c.h.b16 %v947
        %v1012 = vunpack.c.l.b16 %v948
        %v1013 = vunpack.c.h.b16 %v948
        %v1014 = vunpack.c.l.b16 %v949
        %v1015 = vunpack.c.h.b16 %v949
        %v1016 = vunpack.c.l.b16 %v950
        %v1017 = vunpack.c.h.b16 %v950
        %v1018 = vunpack.c.l.b16 %v951
        %v1019 = vunpack.c.h.b16 %v951
        %v1020 = vunpack.c.l.b16 %v952
        %v1021 = vunpack.c.h.b16 %v952
        %v1022 = vunpack.c.l.b16 %v953
        %v1023 = vunpack.c.h.b16 %v953
        %v1024 = vunpack.c.l.b16 %v954
        %v1025 = vunpack.c.h.b16 %v954
        %v1026 = vunpack.c.l.b16 %v955
        %v1027 = vunpack.c.h.b16 %v955
        %v1028 = vpack.c.b16 %v986, %v980
        %v1029 = vpack.c.b16 %v987, %v981
        %v1030 = vpack.c.b16 %v988, %v982
        %v1031 = vpack.c.b16 %v989, %v983
        %v1032 = vpack.c.b16 %v990, %v984
        %v1033 = vpack.c.b16 %v991, %v985
        %v1034 = vpack.c.b16 %v998, %v992
        %v1035 = vpack.c.b16 %v999, %v993
        %v1036 = vpack.c.b16 %v1000, %v994
        %v1037 = vpack.c.b16 %v1001, %v995
        %v1038 = vpack.c.b16 %v1002, %v996
        %v1039 = vpack.c.b16 %v1003, %v997
        %v1040 = vpack.c.b16 %v1010, %v1004
        %v1041 = vpack.c.b16 %v1011, %v1005
        %v1042 = vpack.c.b16 %v1012, %v1006
        %v1043 = vpack.c.b16 %v1013, %v1007
        %v1044 = vpack.c.b16 %v1014, %v1008
        %v1045 = vpack.c.b16 %v1015, %v1009
        %v1046 = vpack.c.b16 %v1022, %v1016
        %v1047 = vpack.c.b16 %v1023, %v1017
        %v1048 = vpack.c.b16 %v1024, %v1018
        %v1049 = vpack.c.b16 %v1025, %v1019
        %v1050 = vpack.c.b16 %v1026, %v1020
        %v1051 = vpack.c.b16 %v1027, %v1021
        %1076 = vmatprep.subr.bf16.mxu0 %v851
        %1077 = vmatpush1.bf16.msra.mxu0 %v850
        %1078 = vmatprep.subr.bf16.mxu0 %v849
        %1079 = vmatpush1.bf16.msra.mxu0 %v848
        %1080 = vmatprep.subr.bf16.mxu0 %v847
        %1081 = vmatpush1.bf16.msra.mxu0 %v846
        %1082 = vmatprep.subr.bf16.mxu0 %v845
        %1083 = vmatpush1.bf16.msra.mxu0 %v844
        %1084 = vmatprep.subr.bf16.mxu0 %v843
        %1085 = vmatpush1.bf16.msra.mxu0 %v842
        %1086 = vmatprep.subr.bf16.mxu0 %v841
        %1087 = vmatpush1.bf16.msra.mxu0 %v840
        %1088 = vmatprep.subr.bf16.mxu0 %v839
        %1089 = vmatpush1.bf16.msra.mxu0 %v838
        %1090 = vmatprep.subr.bf16.mxu0 %v837
        %1091 = vmatpush1.bf16.msra.mxu0 %v836
        %1092 = vmatprep.subr.bf16.mxu0 %v867
        %1093 = vmatpush2.bf16.msra.mxu0 %v866
        %1094 = vmatprep.subr.bf16.mxu0 %v865
        %1095 = vmatpush2.bf16.msra.mxu0 %v864
        %1096 = vmatprep.subr.bf16.mxu0 %v863
        %1097 = vmatpush2.bf16.msra.mxu0 %v862
        %1098 = vmatprep.subr.bf16.mxu0 %v861
        %1099 = vmatpush2.bf16.msra.mxu0 %v860
        %1100 = vmatprep.subr.bf16.mxu0 %v859
        %1101 = vmatpush2.bf16.msra.mxu0 %v858
        %1102 = vmatprep.subr.bf16.mxu0 %v857
        %1103 = vmatpush2.bf16.msra.mxu0 %v856
        %1104 = vmatprep.subr.bf16.mxu0 %v855
        %1105 = vmatpush2.bf16.msra.mxu0 %v854
        %1106 = vmatprep.subr.bf16.mxu0 %v853
        %1107 = vmatpush2.bf16.msra.mxu0 %v852
        %1108 = vmatprep.mubr.bf16.mxu0 %v1029
        %1109 = vmatmul.mubr.bf16.gmra.mxu0 %v1028
        %v1110 = vpop.f32.mrf.mxu0
        %v1111 = vadd.f32 0.0, %v1110
        %v1112 = vpop.f32.mrf.mxu0
        %v1113 = vadd.f32 0.0, %v1112
        %v1114 = vpop.f32.mrf.mxu0
        %v1115 = vadd.f32 0.0, %v1114
        %v1116 = vpop.f32.mrf.mxu0
        %v1117 = vadd.f32 0.0, %v1116
        %1118 = vmatprep.mubr.bf16.mxu0 %v1035
        %1119 = vmatmul.mubr.bf16.gmra.mxu0 %v1034
        %v1120 = vpop.f32.mrf.mxu0
        %v1121 = vadd.f32 0.0, %v1120
        %v1122 = vpop.f32.mrf.mxu0
        %v1123 = vadd.f32 0.0, %v1122
        %v1124 = vpop.f32.mrf.mxu0
        %v1125 = vadd.f32 0.0, %v1124
        %v1126 = vpop.f32.mrf.mxu0
        %v1127 = vadd.f32 0.0, %v1126
        %1128 = vmatprep.mubr.bf16.mxu0 %v1041
        %1129 = vmatmul.mubr.bf16.gmra.mxu0 %v1040
        %v1130 = vpop.f32.mrf.mxu0
        %v1131 = vadd.f32 0.0, %v1130
        %v1132 = vpop.f32.mrf.mxu0
        %v1133 = vadd.f32 0.0, %v1132
        %v1134 = vpop.f32.mrf.mxu0
        %v1135 = vadd.f32 0.0, %v1134
        %v1136 = vpop.f32.mrf.mxu0
        %v1137 = vadd.f32 0.0, %v1136
        %1138 = vmatprep.mubr.bf16.mxu0 %v1047
        %1139 = vmatmul.mubr.bf16.gmra.mxu0 %v1046
        %v1140 = vpop.f32.mrf.mxu0
        %v1141 = vadd.f32 0.0, %v1140
        %v1142 = vpop.f32.mrf.mxu0
        %v1143 = vadd.f32 0.0, %v1142
        %v1144 = vpop.f32.mrf.mxu0
        %v1145 = vadd.f32 0.0, %v1144
        %v1146 = vpop.f32.mrf.mxu0
        %v1147 = vadd.f32 0.0, %v1146
        %1148 = vdwg.mxu0
        %1149 = vmatprep.subr.bf16.mxu0 %v883
        %1150 = vmatpush1.bf16.msra.mxu0 %v882
        %1151 = vmatprep.subr.bf16.mxu0 %v881
        %1152 = vmatpush1.bf16.msra.mxu0 %v880
        %1153 = vmatprep.subr.bf16.mxu0 %v879
        %1154 = vmatpush1.bf16.msra.mxu0 %v878
        %1155 = vmatprep.subr.bf16.mxu0 %v877
        %1156 = vmatpush1.bf16.msra.mxu0 %v876
        %1157 = vmatprep.subr.bf16.mxu0 %v875
        %1158 = vmatpush1.bf16.msra.mxu0 %v874
        %1159 = vmatprep.subr.bf16.mxu0 %v873
        %1160 = vmatpush1.bf16.msra.mxu0 %v872
        %1161 = vmatprep.subr.bf16.mxu0 %v871
        %1162 = vmatpush1.bf16.msra.mxu0 %v870
        %1163 = vmatprep.subr.bf16.mxu0 %v869
        %1164 = vmatpush1.bf16.msra.mxu0 %v868
        %1165 = vmatprep.subr.bf16.mxu0 %v899
        %1166 = vmatpush2.bf16.msra.mxu0 %v898
        %1167 = vmatprep.subr.bf16.mxu0 %v897
        %1168 = vmatpush2.bf16.msra.mxu0 %v896
        %1169 = vmatprep.subr.bf16.mxu0 %v895
        %1170 = vmatpush2.bf16.msra.mxu0 %v894
        %1171 = vmatprep.subr.bf16.mxu0 %v893
        %1172 = vmatpush2.bf16.msra.mxu0 %v892
        %1173 = vmatprep.subr.bf16.mxu0 %v891
        %1174 = vmatpush2.bf16.msra.mxu0 %v890
        %1175 = vmatprep.subr.bf16.mxu0 %v889
        %1176 = vmatpush2.bf16.msra.mxu0 %v888
        %1177 = vmatprep.subr.bf16.mxu0 %v887
        %1178 = vmatpush2.bf16.msra.mxu0 %v886
        %1179 = vmatprep.subr.bf16.mxu0 %v885
        %1180 = vmatpush2.bf16.msra.mxu0 %v884
        %1181 = vmatprep.mubr.bf16.mxu0 %v1031
        %1182 = vmatmul.mubr.bf16.gmra.mxu0 %v1030
        %v1183 = vpop.f32.mrf.mxu0
        %v1184 = vadd.f32 %v1111, %v1183
        %v1185 = vpop.f32.mrf.mxu0
        %v1186 = vadd.f32 %v1113, %v1185
        %v1187 = vpop.f32.mrf.mxu0
        %v1188 = vadd.f32 %v1115, %v1187
        %v1189 = vpop.f32.mrf.mxu0
        %v1190 = vadd.f32 %v1117, %v1189
        %1191 = vmatprep.mubr.bf16.mxu0 %v1037
        %1192 = vmatmul.mubr.bf16.gmra.mxu0 %v1036
        %v1193 = vpop.f32.mrf.mxu0
        %v1194 = vadd.f32 %v1121, %v1193
        %v1195 = vpop.f32.mrf.mxu0
        %v1196 = vadd.f32 %v1123, %v1195
        %v1197 = vpop.f32.mrf.mxu0
        %v1198 = vadd.f32 %v1125, %v1197
        %v1199 = vpop.f32.mrf.mxu0
        %v1200 = vadd.f32 %v1127, %v1199
        %1201 = vmatprep.mubr.bf16.mxu0 %v1043
        %1202 = vmatmul.mubr.bf16.gmra.mxu0 %v1042
        %v1203 = vpop.f32.mrf.mxu0
        %v1204 = vadd.f32 %v1131, %v1203
        %v1205 = vpop.f32.mrf.mxu0
        %v1206 = vadd.f32 %v1133, %v1205
        %v1207 = vpop.f32.mrf.mxu0
        %v1208 = vadd.f32 %v1135, %v1207
        %v1209 = vpop.f32.mrf.mxu0
        %v1210 = vadd.f32 %v1137, %v1209
        %1211 = vmatprep.mubr.bf16.mxu0 %v1049
        %1212 = vmatmul.mubr.bf16.gmra.mxu0 %v1048
        %v1213 = vpop.f32.mrf.mxu0
        %v1214 = vadd.f32 %v1141, %v1213
        %v1215 = vpop.f32.mrf.mxu0
        %v1216 = vadd.f32 %v1143, %v1215
        %v1217 = vpop.f32.mrf.mxu0
        %v1218 = vadd.f32 %v1145, %v1217
        %v1219 = vpop.f32.mrf.mxu0
        %v1220 = vadd.f32 %v1147, %v1219
        %1221 = vdwg.mxu0
        %1222 = vmatprep.subr.bf16.mxu0 %v915
        %1223 = vmatpush1.bf16.msra.mxu0 %v914
        %1224 = vmatprep.subr.bf16.mxu0 %v913
        %1225 = vmatpush1.bf16.msra.mxu0 %v912
        %1226 = vmatprep.subr.bf16.mxu0 %v911
        %1227 = vmatpush1.bf16.msra.mxu0 %v910
        %1228 = vmatprep.subr.bf16.mxu0 %v909
        %1229 = vmatpush1.bf16.msra.mxu0 %v908
        %1230 = vmatprep.subr.bf16.mxu0 %v907
        %1231 = vmatpush1.bf16.msra.mxu0 %v906
        %1232 = vmatprep.subr.bf16.mxu0 %v905
        %1233 = vmatpush1.bf16.msra.mxu0 %v904
        %1234 = vmatprep.subr.bf16.mxu0 %v903
        %1235 = vmatpush1.bf16.msra.mxu0 %v902
        %1236 = vmatprep.subr.bf16.mxu0 %v901
        %1237 = vmatpush1.bf16.msra.mxu0 %v900
        %1238 = vmatprep.subr.bf16.mxu0 %v931
        %1239 = vmatpush2.bf16.msra.mxu0 %v930
        %1240 = vmatprep.subr.bf16.mxu0 %v929
        %1241 = vmatpush2.bf16.msra.mxu0 %v928
        %1242 = vmatprep.subr.bf16.mxu0 %v927
        %1243 = vmatpush2.bf16.msra.mxu0 %v926
        %1244 = vmatprep.subr.bf16.mxu0 %v925
        %1245 = vmatpush2.bf16.msra.mxu0 %v924
        %1246 = vmatprep.subr.bf16.mxu0 %v923
        %1247 = vmatpush2.bf16.msra.mxu0 %v922
        %1248 = vmatprep.subr.bf16.mxu0 %v921
        %1249 = vmatpush2.bf16.msra.mxu0 %v920
        %1250 = vmatprep.subr.bf16.mxu0 %v919
        %1251 = vmatpush2.bf16.msra.mxu0 %v918
        %1252 = vmatprep.subr.bf16.mxu0 %v917
        %1253 = vmatpush2.bf16.msra.mxu0 %v916
        %1254 = vmatprep.mubr.bf16.mxu0 %v1033
        %1255 = vmatmul.mubr.bf16.gmra.mxu0 %v1032
        %v1256 = vpop.f32.mrf.mxu0
        %v1257 = vadd.f32 %v1184, %v1256
        %v1258 = vpop.f32.mrf.mxu0
        %v1259 = vadd.f32 %v1186, %v1258
        %v1260 = vpop.f32.mrf.mxu0
        %v1261 = vadd.f32 %v1188, %v1260
        %v1262 = vpop.f32.mrf.mxu0
        %v1263 = vadd.f32 %v1190, %v1262
        %1264 = vmatprep.mubr.bf16.mxu0 %v1039
        %1265 = vmatmul.mubr.bf16.gmra.mxu0 %v1038
        %v1266 = vpop.f32.mrf.mxu0
        %v1267 = vadd.f32 %v1194, %v1266
        %v1268 = vpop.f32.mrf.mxu0
        %v1269 = vadd.f32 %v1196, %v1268
        %v1270 = vpop.f32.mrf.mxu0
        %v1271 = vadd.f32 %v1198, %v1270
        %v1272 = vpop.f32.mrf.mxu0
        %v1273 = vadd.f32 %v1200, %v1272
        %1274 = vmatprep.mubr.bf16.mxu0 %v1045
        %1275 = vmatmul.mubr.bf16.gmra.mxu0 %v1044
        %v1276 = vpop.f32.mrf.mxu0
        %v1277 = vadd.f32 %v1204, %v1276
        %v1278 = vpop.f32.mrf.mxu0
        %v1279 = vadd.f32 %v1206, %v1278
        %v1280 = vpop.f32.mrf.mxu0
        %v1281 = vadd.f32 %v1208, %v1280
        %v1282 = vpop.f32.mrf.mxu0
        %v1283 = vadd.f32 %v1210, %v1282
        %1284 = vmatprep.mubr.bf16.mxu0 %v1051
        %1285 = vmatmul.mubr.bf16.gmra.mxu0 %v1050
        %v1286 = vpop.f32.mrf.mxu0
        %v1287 = vadd.f32 %v1214, %v1286
        %v1288 = vpop.f32.mrf.mxu0
        %v1289 = vadd.f32 %v1216, %v1288
        %v1290 = vpop.f32.mrf.mxu0
        %v1291 = vadd.f32 %v1218, %v1290
        %v1292 = vpop.f32.mrf.mxu0
        %v1293 = vadd.f32 %v1220, %v1292
        %1294 = vdwg.mxu0
        %v1295 = vadd.f32 %v1257, %v1277
        %v1296 = vadd.f32 %v1259, %v1279
        %v1297 = vadd.f32 %v1261, %v1281
        %v1298 = vadd.f32 %v1263, %v1283
        %v1299 = vadd.f32 %v1267, %v1287
        %v1300 = vadd.f32 %v1269, %v1289
        %v1301 = vadd.f32 %v1271, %v1291
        %v1302 = vadd.f32 %v1273, %v1293
        %1303 = vst [vmem:[%s174] sm:$0xff] %v1295
        %1304 = vst [vmem:[%s174 + $0x8] sm:$0xff] %v1296
        %1305 = vst [vmem:[%s174 + $0x10] sm:$0xff] %v1297
        %1306 = vst [vmem:[%s174 + $0x18] sm:$0xff] %v1298
        %1307 = vst [vmem:[%s174 + $0x20] sm:$0xff] %v1299
        %1308 = vst [vmem:[%s174 + $0x28] sm:$0xff] %v1300
        %1309 = vst [vmem:[%s174 + $0x30] sm:$0xff] %v1301
        %1310 = vst [vmem:[%s174 + $0x38] sm:$0xff] %v1302
        %s1311 = sand.u32 %s75, 1
        %s1312 = scalar_lea.sflag [#allocation4], %s1311
        %s1313 = sand.u32 %s75, 1
        %s1314 = smul.addr %s1313, 64
        %s1315 = scalar_lea.vmem [#allocation7], %s1314
        // Predicated region
        $region37: #{tpu_custom_call.1} parent=27 // pred_check
          %p1316 = pneg %p85
        $region38: #{tpu_custom_call.1} parent=27 // pred_check_branch
          %1318 = sbr.rel (%p1316) target = $region40
        $region39: #{tpu_custom_call.1} parent=27 // pred_region
          %s1319 = smul.u32 2, %s20
          %s1321 = ssub.s32 1024, 1024
          %1322 = vsyncadd %s1312, %s1321
          %s1323 = smul.addr %s1319, 128
          %s1324 = scalar_lea.hbm %s2, %s1323
          %s1325 = sshll.u32 %s1315, 4
          %s1326 = int_to_ptr.vmem [resolvable:$true] %s1325
          %1331 = dma.vmem_to_hbm [thread:$0]  %s1326, 1024, %s1324, %s1312, 256, 512, 16
        $region40: #{tpu_custom_call.1} parent=27 // pred_fallthru
          _
      $region28: #{tpu_custom_call.1} parent=5 // pred_fallthru
        _
      %p1332 = scmp.le.s32.totalorder 2, %s15
      // Predicated region
      $region41: #{tpu_custom_call.1} parent=5 // pred_check
        %p1333 = pneg %p1332
      $region42: #{tpu_custom_call.1} parent=5 // pred_check_branch
        %1335 = sbr.rel (%p1333) target = $region44
      $region43: #{tpu_custom_call.1} parent=5 // pred_region
        %s1336 = ssub.s32 %s15, 2
        // Predicated region
        $region45: #{tpu_custom_call.1} parent=43 // pred_check
          %p1337 = pneg %p91
        $region46: #{tpu_custom_call.1} parent=43 // pred_check_branch
          %1339 = sbr.rel (%p1337) target = $region48
        $region47: #{tpu_custom_call.1} parent=43 // pred_region
          %s1340 = sand.u32 %s76, 1
          %s1341 = scalar_lea.sflag [#allocation4], %s1340
          %s1342 = sand.u32 %s76, 1
          %s1343 = smul.addr %s1342, 64
          %s1344 = scalar_lea.vmem [#allocation7], %s1343
          %1345 = dma.done %s1341, 1024
        $region48: #{tpu_custom_call.1} parent=43 // pred_fallthru
          _
      $region44: #{tpu_custom_call.1} parent=5 // pred_fallthru
        _
    $region6: #{tpu_custom_call.1} parent=1 // loop_footer
      %s19 = sadd.s32 1, %s15
    $region7: #{tpu_custom_call.1} parent=1 // loop_footer_branch
      %14 = sbr.rel target = $region3
    $region8: #{tpu_custom_call.1} parent=1 // loop_exit
      _
    %1346 = vsyncpa [#allocation3], 1
    %s1347 = scalar_lea.sflag [#allocation3], 1
    %1348 = vsyncpa %s1347, 1
    %1349 = vsyncpa [#allocation6], 1
    %1350 = vsyncpa [#allocation4], 1
    %s1351 = scalar_lea.sflag [#allocation4], 1
    %1352 = vsyncpa %s1351, 1

</llo_original>
